<compile_context>
chip_gen: v7x
topology: tpu7x:2x2x1
jax: 0.10.0
libtpu: 0.0.40
codegen_flags: <defaults>
</compile_context>

<pallas_src>
import functools

import jax
import jax.numpy as jnp
from jax.experimental import pallas as pl
from jax.experimental.pallas import tpu as pltpu

LANE = 128     # lane width: feature dims padded to multiples of this
SUBLANE = 8    # sublane width: per-graph node dim padded to multiples of this


def _round_up(x, m):
    return (x + m - 1) // m * m


def _vmem_limit_bytes():
    """Scoped-VMEM request with headroom (never the full physical VMEM)."""
    try:
        cap = pltpu.get_tpu_info().vmem_capacity_bytes
    except Exception:
        cap = 64 * 1024 * 1024  # v7x worst case
    return min((cap * 3) // 4, 96 * 1024 * 1024)


# ---------------------------------------------------------------------------
# Pallas kernel: one grid step = one graph of the batch (block-diagonal A).
# ---------------------------------------------------------------------------
def _graph_encoder_kernel(a_ref, x_ref, w_ref, b_ref, o_ref, h_ref, *, n_layers):
    """Fused GraphEncoder forward for a single graph block.

    a_ref : (Np, Np)     bf16  this graph's normalized adjacency (zero-padded)
    x_ref : (Np, Fp)     f32   this graph's input node features (zero-padded)
    w_ref : (L, Fp, Fp)  bf16  stacked, zero-padded layer weights (resident)
    b_ref : (L, 1, Fp)   f32   stacked, zero-padded layer biases
    o_ref : (Np, Fp)     f32   this graph's output node embeddings
    h_ref : (Np, Fp)     bf16  VMEM scratch: running activation
    """
    h_ref[...] = x_ref[...].astype(jnp.bfloat16)
    a = a_ref[...]  # load A_hat once; reused by every layer
    # Static unroll is fine for a handful of layers.
    # TODO(synk): switch to lax.fori_loop with dynamic w_ref[layer]/b_ref[layer]
    # indexing if n_layers grows large (keeps bundle footprint constant).
    for layer in range(n_layers):
        # Message passing: agg = A_hat @ H   (bf16 x bf16 -> f32 accumulation).
        agg = jnp.dot(a, h_ref[...], preferred_element_type=jnp.float32)
        # Dense projection: bf16 operands, f32 accumulation.
        out = jnp.dot(agg.astype(jnp.bfloat16), w_ref[layer],
                      preferred_element_type=jnp.float32)
        out = out + b_ref[layer]                      # bias in f32
        if layer < n_layers - 1:                      # ReLU after all but last
            h_ref[...] = jnp.maximum(out, 0.0).astype(jnp.bfloat16)
        else:                                         # last layer -> straight to output
            o_ref[...] = out.astype(o_ref.dtype)


def graph_encoder_pallas(a_blocks, x_blocks, w_stack, b_stack):
    """Run the fused kernel over the per-graph grid.

    a_blocks: (B, Np, Np) bf16, x_blocks: (B, Np, Fp) f32,
    w_stack: (L, Fp, Fp) bf16, b_stack: (L, 1, Fp) f32.
    Returns (B, Np, Fp) f32 padded node embeddings.
    """
    B, n_pad, _ = a_blocks.shape
    f_pad = x_blocks.shape[2]
    n_layers = w_stack.shape[0]

    flops = B * n_layers * (2 * n_pad * n_pad * f_pad + 2 * n_pad * f_pad * f_pad)
    bytes_accessed = (a_blocks.size * 2 + x_blocks.size * 4 + w_stack.size * 2
                      + b_stack.size * 4 + B * n_pad * f_pad * 4)

    kernel = functools.partial(_graph_encoder_kernel, n_layers=n_layers)
    return pl.pallas_call(
        kernel,
        out_shape=jax.ShapeDtypeStruct((B, n_pad, f_pad), jnp.float32),
        grid=(B,),
        in_specs=[
            pl.BlockSpec((None, n_pad, n_pad), lambda g: (g, 0, 0)),
            pl.BlockSpec((None, n_pad, f_pad), lambda g: (g, 0, 0)),
            # Weights/biases: constant block index -> fetched once, kept resident
            # (tiny, so default buffering cost is negligible).
            pl.BlockSpec((n_layers, f_pad, f_pad), lambda g: (0, 0, 0)),
            pl.BlockSpec((n_layers, 1, f_pad), lambda g: (0, 0, 0)),
        ],
        out_specs=pl.BlockSpec((None, n_pad, f_pad), lambda g: (g, 0, 0)),
        scratch_shapes=[pltpu.VMEM((n_pad, f_pad), jnp.bfloat16)],
        compiler_params=pltpu.CompilerParams(
            dimension_semantics=("parallel",),   # shards graphs across v7x's 2 TCs
            vmem_limit_bytes=_vmem_limit_bytes()),
        cost_estimate=pl.CostEstimate(
            flops=flops, transcendentals=0, bytes_accessed=bytes_accessed),
    )(a_blocks, x_blocks, w_stack, b_stack)


# ---------------------------------------------------------------------------
# One-time (cacheable) preprocessing: graph structure and parameters.
# ---------------------------------------------------------------------------
def normalize_adjacency_blocks(adj_blocks):
    """Per-graph A_hat = D_in^{-1/2} A D_out^{-1/2}; degrees clamped to >= 1.

    Zero-padded rows/cols have zero degree -> clamped to 1 -> stay exactly zero.
    (DGL maps zero-degree 1/sqrt(deg)=inf to 0; identical when self-loops exist.)
    """
    in_deg = jnp.maximum(adj_blocks.sum(axis=2), 1.0)    # per-dst (row sums)
    out_deg = jnp.maximum(adj_blocks.sum(axis=1), 1.0)   # per-src (col sums)
    return (jax.lax.rsqrt(in_deg)[:, :, None] * adj_blocks
            * jax.lax.rsqrt(out_deg)[:, None, :])


def prepare_batched_graph(adj_blocks_list):
    """Pad each graph's adjacency to a common (Np, Np), normalize, cast to bf16.

    Do this once per batched graph and reuse across forward calls.
    """
    batch_num_nodes = tuple(int(a.shape[0]) for a in adj_blocks_list)
    n_pad = _round_up(max(batch_num_nodes), SUBLANE)
    blocks = jnp.stack([
        jnp.zeros((n_pad, n_pad), jnp.float32).at[:a.shape[0], :a.shape[1]].set(a)
        for a in adj_blocks_list])
    a_hat = normalize_adjacency_blocks(blocks).astype(jnp.bfloat16)
    return {"a_hat": a_hat, "batch_num_nodes": batch_num_nodes, "n_pad": n_pad}


def prepare_params(params):
    """Stack + zero-pad layer weights/biases; weights in bf16 (MXU-native)."""
    f_max = max(max(w.shape[0], w.shape[1]) for w, _ in params)
    f_pad = _round_up(f_max, LANE)   # only as wide as the real dims require
    w_stack = jnp.stack([
        jnp.zeros((f_pad, f_pad), jnp.float32).at[:w.shape[0], :w.shape[1]].set(w)
        for w, _ in params]).astype(jnp.bfloat16)
    b_stack = jnp.stack([
        jnp.zeros((1, f_pad), jnp.float32).at[0, :b.shape[0]].set(b)
        for _, b in params])
    return w_stack, b_stack, f_pad


# ---------------------------------------------------------------------------
# Forward pass (module semantics: returns [batch, max_num_node, out_size]).
# ---------------------------------------------------------------------------
def graph_encoder_forward(graph, node_feats, w_stack, b_stack, f_pad, out_size):
    batch_num_nodes = graph["batch_num_nodes"]
    n_pad = graph["n_pad"]
    B = len(batch_num_nodes)
    max_n = max(batch_num_nodes)
    f_in = node_feats.shape[1]

    # Scatter flat [sum(n_i), f_in] features into the padded per-graph layout.
    x_blocks = jnp.zeros((B, n_pad, f_pad), jnp.float32)
    off = 0
    for g, n in enumerate(batch_num_nodes):
        x_blocks = x_blocks.at[g, :n, :f_in].set(node_feats[off:off + n])
        off += n

    out_padded = graph_encoder_pallas(graph["a_hat"], x_blocks, w_stack, b_stack)

    # unbatch_node_embeddings: padded rows carry propagated bias -> zero them,
    # matching the PyTorch zero-padding.
    out = out_padded[:, :max_n, :out_size]
    valid = (jnp.arange(max_n)[None, :]
             < jnp.asarray(batch_num_nodes, jnp.int32)[:, None])
    return out * valid[:, :, None].astype(out.dtype)


# ---------------------------------------------------------------------------
# Plain-JAX f32 reference (dense block-diagonal), for tolerance checking.
# ---------------------------------------------------------------------------
def graph_encoder_reference(adj_blocks_list, node_feats, params):
    batch_num_nodes = [a.shape[0] for a in adj_blocks_list]
    n_total = sum(batch_num_nodes)
    adj = jnp.zeros((n_total, n_total), jnp.float32)
    off = 0
    for a in adj_blocks_list:
        n = a.shape[0]
        adj = adj.at[off:off + n, off:off + n].set(a)
        off += n
    in_deg = jnp.maximum(adj.sum(axis=1), 1.0)
    out_deg = jnp.maximum(adj.sum(axis=0), 1.0)
    a_hat = jax.lax.rsqrt(in_deg)[:, None] * adj * jax.lax.rsqrt(out_deg)[None, :]
    h = node_feats
    for i, (w, b) in enumerate(params):
        h = a_hat @ h @ w + b[None, :]
        if i < len(params) - 1:
            h = jnp.maximum(h, 0.0)
    max_n = max(batch_num_nodes)
    outs, off = [], 0
    for n in batch_num_nodes:
        chunk = jnp.pad(h[off:off + n], ((0, max_n - n), (0, 0)))
        outs.append(chunk[None])
        off += n
    return jnp.concatenate(outs, axis=0)


# ---------------------------------------------------------------------------
# Parameter init (mirrors GraphEncoder.__init__)
# ---------------------------------------------------------------------------
def xavier_uniform(key, shape):
    fan_in, fan_out = shape
    limit = jnp.sqrt(6.0 / (fan_in + fan_out))
    return jax.random.uniform(key, shape, jnp.float32, -limit, limit)


def init_graph_encoder_params(key, in_feat, n_layers, hidden_size, out_size):
    dims = [(in_feat, hidden_size)]
    dims += [(hidden_size, hidden_size)] * (n_layers - 2)
    dims += [(hidden_size, out_size)]
    params = []
    for fi, fo in dims:
        key, sub = jax.random.split(key)
        params.append((xavier_uniform(sub, (fi, fo)), jnp.zeros((fo,), jnp.float32)))
    return params


# ---------------------------------------------------------------------------
# Demo
# ---------------------------------------------------------------------------
if __name__ == "__main__":
    # Batch of 2 graphs (5 and 3 nodes), in_feat=16, 3 layers, hidden=32, out=32.
    batch_num_nodes = [5, 3]
    in_feat, n_layers, hidden_size, out_size = 16, 3, 32, 32

    key = jax.random.PRNGKey(0)
    k_adj, k_feat, k_param = jax.random.split(key, 3)

    # Per-graph random directed adjacency with self-loops.
    adj_blocks_list = []
    for n in batch_num_nodes:
        k_adj, sub = jax.random.split(k_adj)
        block = (jax.random.uniform(sub, (n, n)) > 0.5).astype(jnp.float32)
        block = jnp.maximum(block, jnp.eye(n, dtype=jnp.float32))
        adj_blocks_list.append(block)

    n_total = sum(batch_num_nodes)
    node_feats = jax.random.normal(k_feat, (n_total, in_feat), jnp.float32)
    params = init_graph_encoder_params(k_param, in_feat, n_layers, hidden_size, out_size)

    # One-time, cacheable preprocessing (graph structure + parameters).
    graph = prepare_batched_graph(adj_blocks_list)
    w_stack, b_stack, f_pad = prepare_params(params)

    out3d = graph_encoder_forward(graph, node_feats, w_stack, b_stack, f_pad, out_size)
    out3d = jax.block_until_ready(out3d)

    assert out3d.shape == (len(batch_num_nodes), max(batch_num_nodes), out_size)
    assert bool(jnp.all(jnp.isfinite(out3d)))

    # Tolerance check of the bf16 kernel against the f32 reference.
    ref = graph_encoder_reference(adj_blocks_list, node_feats, params)
    err = float(jnp.max(jnp.abs(out3d - ref)))
    scale = 1.0 + float(jnp.max(jnp.abs(ref)))
    assert err <= 0.05 * scale, f"max abs err {err} too large (scale {scale})"

    print("KERNEL_OK")
</pallas_src>

<mosaic_0001>
module attributes {stable_mosaic.version = 11 : i64} {
  func.func @_graph_encoder_kernel(%arg0: i32, %arg1: memref<1x8x8xbf16, #tpu.memory_space<vmem>>, %arg2: memref<1x8x128xf32, #tpu.memory_space<vmem>>, %arg3: memref<3x128x128xbf16, #tpu.memory_space<vmem>>, %arg4: memref<3x1x128xf32, #tpu.memory_space<vmem>>, %arg5: memref<1x8x128xf32, #tpu.memory_space<vmem>>, %arg6: memref<8x128xbf16, #tpu.memory_space<vmem>>) attributes {dimension_semantics = [#tpu.dimension_semantics<parallel>], iteration_bounds = array<i64: 2>, scalar_prefetch = 0 : i64, scratch_operands = 1 : i64, tpu.core_type = #tpu.core_type<tc>, window_params = [{transform_indices = @transform_0, window_bounds = array<i64: 1, 8, 8>}, {transform_indices = @transform_1, window_bounds = array<i64: 1, 8, 128>}, {pipeline_mode = #tpu.pipeline_mode<synchronous>, transform_indices = @transform_2, window_bounds = array<i64: 3, 128, 128>}, {pipeline_mode = #tpu.pipeline_mode<synchronous>, transform_indices = @transform_3, window_bounds = array<i64: 3, 1, 128>}, {transform_indices = @transform_4, window_bounds = array<i64: 1, 8, 128>}]} {
    %c0 = arith.constant 0 : index
    %c0_0 = arith.constant 0 : index
    %c0_1 = arith.constant 0 : index
    %0 = vector.load %arg2[%c0, %c0_0, %c0_1] : memref<1x8x128xf32, #tpu.memory_space<vmem>>, vector<1x8x128xf32>
    %1 = vector.shape_cast %0 : vector<1x8x128xf32> to vector<8x128xf32>
    %2 = arith.truncf %1 : vector<8x128xf32> to vector<8x128xbf16>
    %c0_2 = arith.constant 0 : index
    %c0_3 = arith.constant 0 : index
    %3 = vector.load %arg6[%c0_2, %c0_3] : memref<8x128xbf16, #tpu.memory_space<vmem>>, vector<8x128xbf16>
    tpu.vector_store %arg6[%c0_2, %c0_3], %2 {strides = array<i32>} : memref<8x128xbf16, #tpu.memory_space<vmem>>, vector<8x128xbf16>,
    %c0_4 = arith.constant 0 : index
    %c0_5 = arith.constant 0 : index
    %c0_6 = arith.constant 0 : index
    %4 = vector.load %arg1[%c0_4, %c0_5, %c0_6] : memref<1x8x8xbf16, #tpu.memory_space<vmem>>, vector<1x8x8xbf16>
    %5 = vector.shape_cast %4 : vector<1x8x8xbf16> to vector<8x8xbf16>
    %c0_7 = arith.constant 0 : index
    %c0_8 = arith.constant 0 : index
    %6 = vector.load %arg6[%c0_7, %c0_8] : memref<8x128xbf16, #tpu.memory_space<vmem>>, vector<8x128xbf16>
    %cst = arith.constant dense<0.000000e+00> : vector<8x128xf32>
    %7 = tpu.matmul %5, %6, %cst {dimension_numbers = #tpu.dot_dimension_numbers<[1], [0], [0], [1], [0, 0, 1, 1], [], []>} : vector<8x8xbf16>, vector<8x128xbf16>, vector<8x128xf32> -> vector<8x128xf32>
    %8 = arith.truncf %7 : vector<8x128xf32> to vector<8x128xbf16>
    %c0_9 = arith.constant 0 : index
    %c0_10 = arith.constant 0 : index
    %c0_11 = arith.constant 0 : index
    %9 = vector.load %arg3[%c0_9, %c0_10, %c0_11] : memref<3x128x128xbf16, #tpu.memory_space<vmem>>, vector<1x128x128xbf16>
    %10 = vector.shape_cast %9 : vector<1x128x128xbf16> to vector<128x128xbf16>
    %cst_12 = arith.constant dense<0.000000e+00> : vector<8x128xf32>
    %11 = tpu.matmul %8, %10, %cst_12 {dimension_numbers = #tpu.dot_dimension_numbers<[1], [0], [0], [1], [0, 0, 1, 1], [], []>} : vector<8x128xbf16>, vector<128x128xbf16>, vector<8x128xf32> -> vector<8x128xf32>
    %c0_13 = arith.constant 0 : index
    %c0_14 = arith.constant 0 : index
    %c0_15 = arith.constant 0 : index
    %12 = vector.load %arg4[%c0_13, %c0_14, %c0_15] : memref<3x1x128xf32, #tpu.memory_space<vmem>>, vector<1x1x128xf32>
    %13 = vector.shape_cast %12 : vector<1x1x128xf32> to vector<1x128xf32>
    %14 = vector.broadcast %13 : vector<1x128xf32> to vector<8x128xf32>
    %15 = arith.addf %11, %14 : vector<8x128xf32>
    %cst_16 = arith.constant 0.000000e+00 : f32
    %16 = vector.broadcast %cst_16 : f32 to vector<8x128xf32>
    %17 = arith.maximumf %15, %16 : vector<8x128xf32>
    %18 = arith.truncf %17 : vector<8x128xf32> to vector<8x128xbf16>
    %c0_17 = arith.constant 0 : index
    %c0_18 = arith.constant 0 : index
    %19 = vector.load %arg6[%c0_17, %c0_18] : memref<8x128xbf16, #tpu.memory_space<vmem>>, vector<8x128xbf16>
    tpu.vector_store %arg6[%c0_17, %c0_18], %18 {strides = array<i32>} : memref<8x128xbf16, #tpu.memory_space<vmem>>, vector<8x128xbf16>,
    %c0_19 = arith.constant 0 : index
    %c0_20 = arith.constant 0 : index
    %20 = vector.load %arg6[%c0_19, %c0_20] : memref<8x128xbf16, #tpu.memory_space<vmem>>, vector<8x128xbf16>
    %cst_21 = arith.constant dense<0.000000e+00> : vector<8x128xf32>
    %21 = tpu.matmul %5, %20, %cst_21 {dimension_numbers = #tpu.dot_dimension_numbers<[1], [0], [0], [1], [0, 0, 1, 1], [], []>} : vector<8x8xbf16>, vector<8x128xbf16>, vector<8x128xf32> -> vector<8x128xf32>
    %22 = arith.truncf %21 : vector<8x128xf32> to vector<8x128xbf16>
    %c1 = arith.constant 1 : index
    %c0_22 = arith.constant 0 : index
    %c0_23 = arith.constant 0 : index
    %23 = vector.load %arg3[%c1, %c0_22, %c0_23] : memref<3x128x128xbf16, #tpu.memory_space<vmem>>, vector<1x128x128xbf16>
    %24 = vector.shape_cast %23 : vector<1x128x128xbf16> to vector<128x128xbf16>
    %cst_24 = arith.constant dense<0.000000e+00> : vector<8x128xf32>
    %25 = tpu.matmul %22, %24, %cst_24 {dimension_numbers = #tpu.dot_dimension_numbers<[1], [0], [0], [1], [0, 0, 1, 1], [], []>} : vector<8x128xbf16>, vector<128x128xbf16>, vector<8x128xf32> -> vector<8x128xf32>
    %c1_25 = arith.constant 1 : index
    %c0_26 = arith.constant 0 : index
    %c0_27 = arith.constant 0 : index
    %26 = vector.load %arg4[%c1_25, %c0_26, %c0_27] : memref<3x1x128xf32, #tpu.memory_space<vmem>>, vector<1x1x128xf32>
    %27 = vector.shape_cast %26 : vector<1x1x128xf32> to vector<1x128xf32>
    %28 = vector.broadcast %27 : vector<1x128xf32> to vector<8x128xf32>
    %29 = arith.addf %25, %28 : vector<8x128xf32>
    %cst_28 = arith.constant 0.000000e+00 : f32
    %30 = vector.broadcast %cst_28 : f32 to vector<8x128xf32>
    %31 = arith.maximumf %29, %30 : vector<8x128xf32>
    %32 = arith.truncf %31 : vector<8x128xf32> to vector<8x128xbf16>
    %c0_29 = arith.constant 0 : index
    %c0_30 = arith.constant 0 : index
    %33 = vector.load %arg6[%c0_29, %c0_30] : memref<8x128xbf16, #tpu.memory_space<vmem>>, vector<8x128xbf16>
    tpu.vector_store %arg6[%c0_29, %c0_30], %32 {strides = array<i32>} : memref<8x128xbf16, #tpu.memory_space<vmem>>, vector<8x128xbf16>,
    %c0_31 = arith.constant 0 : index
    %c0_32 = arith.constant 0 : index
    %34 = vector.load %arg6[%c0_31, %c0_32] : memref<8x128xbf16, #tpu.memory_space<vmem>>, vector<8x128xbf16>
    %cst_33 = arith.constant dense<0.000000e+00> : vector<8x128xf32>
    %35 = tpu.matmul %5, %34, %cst_33 {dimension_numbers = #tpu.dot_dimension_numbers<[1], [0], [0], [1], [0, 0, 1, 1], [], []>} : vector<8x8xbf16>, vector<8x128xbf16>, vector<8x128xf32> -> vector<8x128xf32>
    %36 = arith.truncf %35 : vector<8x128xf32> to vector<8x128xbf16>
    %c2 = arith.constant 2 : index
    %c0_34 = arith.constant 0 : index
    %c0_35 = arith.constant 0 : index
    %37 = vector.load %arg3[%c2, %c0_34, %c0_35] : memref<3x128x128xbf16, #tpu.memory_space<vmem>>, vector<1x128x128xbf16>
    %38 = vector.shape_cast %37 : vector<1x128x128xbf16> to vector<128x128xbf16>
    %cst_36 = arith.constant dense<0.000000e+00> : vector<8x128xf32>
    %39 = tpu.matmul %36, %38, %cst_36 {dimension_numbers = #tpu.dot_dimension_numbers<[1], [0], [0], [1], [0, 0, 1, 1], [], []>} : vector<8x128xbf16>, vector<128x128xbf16>, vector<8x128xf32> -> vector<8x128xf32>
    %c2_37 = arith.constant 2 : index
    %c0_38 = arith.constant 0 : index
    %c0_39 = arith.constant 0 : index
    %40 = vector.load %arg4[%c2_37, %c0_38, %c0_39] : memref<3x1x128xf32, #tpu.memory_space<vmem>>, vector<1x1x128xf32>
    %41 = vector.shape_cast %40 : vector<1x1x128xf32> to vector<1x128xf32>
    %42 = vector.broadcast %41 : vector<1x128xf32> to vector<8x128xf32>
    %43 = arith.addf %39, %42 : vector<8x128xf32>
    %c0_40 = arith.constant 0 : index
    %c0_41 = arith.constant 0 : index
    %c0_42 = arith.constant 0 : index
    %44 = vector.load %arg5[%c0_40, %c0_41, %c0_42] : memref<1x8x128xf32, #tpu.memory_space<vmem>>, vector<1x8x128xf32>
    %45 = vector.shape_cast %44 : vector<1x8x128xf32> to vector<8x128xf32>
    %46 = vector.shape_cast %43 : vector<8x128xf32> to vector<1x8x128xf32>
    tpu.vector_store %arg5[%c0_40, %c0_41, %c0_42], %46 {strides = array<i32>} : memref<1x8x128xf32, #tpu.memory_space<vmem>>, vector<1x8x128xf32>,
    return
  }
  func.func @transform_0(%arg0: i32) -> (i32, i32, i32) {
    %c0_i32 = arith.constant 0 : i32
    %c0_i32_0 = arith.constant 0 : i32
    %c0_i32_1 = arith.constant 0 : i32
    return %arg0, %c0_i32, %c0_i32_0 : i32, i32, i32
  }
  func.func @transform_1(%arg0: i32) -> (i32, i32, i32) {
    %c0_i32 = arith.constant 0 : i32
    %c0_i32_0 = arith.constant 0 : i32
    %c0_i32_1 = arith.constant 0 : i32
    return %arg0, %c0_i32, %c0_i32_0 : i32, i32, i32
  }
  func.func @transform_2(%arg0: i32) -> (i32, i32, i32) {
    %c0_i32 = arith.constant 0 : i32
    %c0_i32_0 = arith.constant 0 : i32
    %c0_i32_1 = arith.constant 0 : i32
    %c0_i32_2 = arith.constant 0 : i32
    return %c0_i32, %c0_i32_0, %c0_i32_1 : i32, i32, i32
  }
  func.func @transform_3(%arg0: i32) -> (i32, i32, i32) {
    %c0_i32 = arith.constant 0 : i32
    %c0_i32_0 = arith.constant 0 : i32
    %c0_i32_1 = arith.constant 0 : i32
    %c0_i32_2 = arith.constant 0 : i32
    return %c0_i32, %c0_i32_0, %c0_i32_1 : i32, i32, i32
  }
  func.func @transform_4(%arg0: i32) -> (i32, i32, i32) {
    %c0_i32 = arith.constant 0 : i32
    %c0_i32_0 = arith.constant 0 : i32
    %c0_i32_1 = arith.constant 0 : i32
    return %arg0, %c0_i32, %c0_i32_0 : i32, i32, i32
  }
}

</mosaic_0001>

<llo_original>
// kernel: tpu_custom_call.1
$region0: #{tpu_custom_call.1}
  #allocation0 [shape = 'u32[]', space=smem, size = 0x4, offset = 0x4, fixed_abs, tag = 'smem constant byte address 0x4 - core index']
  #allocation1 [shape = 'u32[144,128]{1,0:T(1,128)}', space=vmem, size = 0x12000, scoped, tag = 'internal scratch']
  #allocation2 [shape = 'bf16[8,128]{1,0:T(8,128)(2,1)}', space=vmem, size = 0x800, scoped, tag = 'scratch operand']
  %s0 = inlined_call_operand.hbm [shape: bf16[2,8,8], index: 0, kind: input, shape index: {}]
  %s1 = inlined_call_operand.hbm [shape: f32[2,8,128], index: 1, kind: input, shape index: {}]
  %s2 = inlined_call_operand.hbm [shape: bf16[3,128,128], index: 2, kind: input, shape index: {}]
  %s3 = inlined_call_operand.vmem [shape: f32[3,1,128], index: 3, kind: input, shape index: {}]
  %s4 = inlined_call_operand.hbm [shape: f32[2,8,128], index: 4, kind: output, shape index: {}]
  %s5 = sld [smem:[#allocation0]]
  $region61: #{tpu_custom_call.1} parent=0
    _
  %s7 = ssub.s32 1, %s5
  %s8 = scalar_select 0, %s7, %s5
  $region1: #{tpu_custom_call.1} parent=0
    #allocation3 [shape = 'u8[4096]{0}', space=vmem, size = 0x1000, scoped, tag = 'input window, operand 0']
    #allocation4 [shape = 's32[2]{0}', space=sflag, size = 0x8, scoped, tag = 'scoped memory for tpu_custom_call.1']
    #allocation5 [shape = 's32[2]{0}', space=sflag, size = 0x8, scoped, tag = 'scoped memory for tpu_custom_call.1']
    #allocation6 [shape = 'u8[8192]{0}', space=vmem, size = 0x2000, scoped, tag = 'input window, operand 1']
    #allocation7 [shape = 's32[2]{0}', space=sflag, size = 0x8, scoped, tag = 'scoped memory for tpu_custom_call.1']
    #allocation8 [shape = 'u8[98304]{0}', space=vmem, size = 0x18000, scoped, tag = 'input window, operand 2, single buffered']
    #allocation9 [shape = 'u8[8192]{0}', space=vmem, size = 0x2000, scoped, tag = 'output window, operand 0']
    %9 = vsyncpa [#allocation4], 0
    %s10 = scalar_lea.sflag [#allocation4], 1
    %11 = vsyncpa %s10, 0
    %12 = vsyncpa [#allocation7], 0
    %s13 = scalar_lea.sflag [#allocation7], 1
    %14 = vsyncpa %s13, 0
    %15 = vsyncpa [#allocation5], 0
    %s16 = scalar_lea.sflag [#allocation5], 1
    %17 = vsyncpa %s16, 0
    loop: start=0, step=1, limit=4
    $region2: #{tpu_custom_call.1} parent=1 // loop_pre_header
      _
    $region3: #{tpu_custom_call.1} parent=1 // loop_header
      %s19 = sphi 0, %s23
      %p20 = scmp.ge.s32.totalorder %s19, 4
      %s29 = sphi 0, %s31
      %s32 = sphi 0, %s29
      %s33 = sphi 0, %s32
      %s49 = sphi 0, %s33
      %s55 = sphi 0, %s57
      %s58 = sphi 0, %s55
      %s59 = sphi 0, %s58
      %s75 = sphi 0, %s59
      %s79 = sphi 0, %s79
      %s81 = sphi 0, %s79
      %s82 = sphi 0, %s81
      %s96 = sphi 0, %s82
      %s100 = sphi 0, %s100
      %s102 = sphi 0, %s100
      %s103 = sphi 0, %s102
      %s117 = sphi 0, %s103
      %s123 = sphi 0, %s125
      %s126 = sphi 0, %s123
      %s127 = sphi 0, %s126
      %s143 = sphi 0, %s127
    $region4: #{tpu_custom_call.1} parent=1 // loop_header_branch
      %22 = sbr.rel (%p20) target = $region8
    $region5: #{tpu_custom_call.1} parent=1 // loop_body
      %s24 = ssub.s32 %s19, 1
      %s25 = ssub.s32 %s19, 2
      %s26 = sadd.s32 %s19, 1
      %s27 = ssub.s32 %s19, %s26
      %p28 = scmp.eq.s32.totalorder %s27, 0
      %s30 = sadd.s32 %s29, 1
      %s31 = scalar_select %p28, %s29, %s30
      %p34 = pneg %p28
      %p35 = scmp.eq.s32.totalorder %s19, 1
      %p36 = por %p34, %p35
      %p37 = scmp.ne.s32.totalorder %s29, %s32
      %p38 = scmp.eq.s32.totalorder %s19, 0
      %p39 = por %p37, %p38
      %p40 = scmp.ne.s32.totalorder %s29, %s32
      %p41 = scmp.eq.s32.totalorder %s24, 1
      %p42 = por %p40, %p41
      %p43 = scmp.ne.s32.totalorder %s32, %s33
      %p44 = scmp.eq.s32.totalorder %s24, 0
      %p45 = por %p43, %p44
      %p46 = scmp.ne.s32.totalorder %s32, %s33
      %p47 = scmp.eq.s32.totalorder %s25, 1
      %p48 = por %p46, %p47
      %p50 = scmp.ne.s32.totalorder %s33, %s49
      %p51 = scmp.eq.s32.totalorder %s25, 0
      %p52 = por %p50, %p51
      %s53 = ssub.s32 %s19, %s26
      %p54 = scmp.eq.s32.totalorder %s53, 0
      %s56 = sadd.s32 %s55, 1
      %s57 = scalar_select %p54, %s55, %s56
      %p60 = pneg %p54
      %p61 = scmp.eq.s32.totalorder %s19, 1
      %p62 = por %p60, %p61
      %p63 = scmp.ne.s32.totalorder %s55, %s58
      %p64 = scmp.eq.s32.totalorder %s19, 0
      %p65 = por %p63, %p64
      %p66 = scmp.ne.s32.totalorder %s55, %s58
      %p67 = scmp.eq.s32.totalorder %s24, 1
      %p68 = por %p66, %p67
      %p69 = scmp.ne.s32.totalorder %s58, %s59
      %p70 = scmp.eq.s32.totalorder %s24, 0
      %p71 = por %p69, %p70
      %p72 = scmp.ne.s32.totalorder %s58, %s59
      %p73 = scmp.eq.s32.totalorder %s25, 1
      %p74 = por %p72, %p73
      %p76 = scmp.ne.s32.totalorder %s59, %s75
      %p77 = scmp.eq.s32.totalorder %s25, 0
      %p78 = por %p76, %p77
      %s80 = sadd.s32 %s79, 1
      %p83 = scmp.eq.s32.totalorder %s19, 1
      %p84 = scmp.ne.s32.totalorder %s79, %s81
      %p85 = scmp.eq.s32.totalorder %s19, 0
      %p86 = por %p84, %p85
      %p87 = scmp.ne.s32.totalorder %s79, %s81
      %p88 = scmp.eq.s32.totalorder %s24, 1
      %p89 = por %p87, %p88
      %p90 = scmp.ne.s32.totalorder %s81, %s82
      %p91 = scmp.eq.s32.totalorder %s24, 0
      %p92 = por %p90, %p91
      %p93 = scmp.ne.s32.totalorder %s81, %s82
      %p94 = scmp.eq.s32.totalorder %s25, 1
      %p95 = por %p93, %p94
      %p97 = scmp.ne.s32.totalorder %s82, %s96
      %p98 = scmp.eq.s32.totalorder %s25, 0
      %p99 = por %p97, %p98
      %s101 = sadd.s32 %s100, 1
      %p104 = scmp.eq.s32.totalorder %s19, 1
      %p105 = scmp.ne.s32.totalorder %s100, %s102
      %p106 = scmp.eq.s32.totalorder %s19, 0
      %p107 = por %p105, %p106
      %p108 = scmp.ne.s32.totalorder %s100, %s102
      %p109 = scmp.eq.s32.totalorder %s24, 1
      %p110 = por %p108, %p109
      %p111 = scmp.ne.s32.totalorder %s102, %s103
      %p112 = scmp.eq.s32.totalorder %s24, 0
      %p113 = por %p111, %p112
      %p114 = scmp.ne.s32.totalorder %s102, %s103
      %p115 = scmp.eq.s32.totalorder %s25, 1
      %p116 = por %p114, %p115
      %p118 = scmp.ne.s32.totalorder %s103, %s117
      %p119 = scmp.eq.s32.totalorder %s25, 0
      %p120 = por %p118, %p119
      %s121 = ssub.s32 %s19, %s26
      %p122 = scmp.eq.s32.totalorder %s121, 0
      %s124 = sadd.s32 %s123, 1
      %s125 = scalar_select %p122, %s123, %s124
      %p128 = pneg %p122
      %p129 = scmp.eq.s32.totalorder %s19, 1
      %p130 = por %p128, %p129
      %p131 = scmp.ne.s32.totalorder %s123, %s126
      %p132 = scmp.eq.s32.totalorder %s19, 0
      %p133 = por %p131, %p132
      %p134 = scmp.ne.s32.totalorder %s123, %s126
      %p135 = scmp.eq.s32.totalorder %s24, 1
      %p136 = por %p134, %p135
      %p137 = scmp.ne.s32.totalorder %s126, %s127
      %p138 = scmp.eq.s32.totalorder %s24, 0
      %p139 = por %p137, %p138
      %p140 = scmp.ne.s32.totalorder %s126, %s127
      %p141 = scmp.eq.s32.totalorder %s25, 1
      %p142 = por %p140, %p141
      %p144 = scmp.ne.s32.totalorder %s127, %s143
      %p145 = scmp.eq.s32.totalorder %s25, 0
      %p146 = por %p144, %p145
      %p147 = scmp.le.s32.totalorder 1, %s19
      %p148 = scmp.lt.s32.totalorder %s19, 3
      %p149 = pnand %p147, %p148
      %p150 = pneg %p149
      // Predicated region
      $region9: #{tpu_custom_call.1} parent=5 // pred_check
        _
      $region10: #{tpu_custom_call.1} parent=5 // pred_check_branch
        %152 = sbr.rel (%p149) target = $region12
      $region11: #{tpu_custom_call.1} parent=5 // pred_region
        %s153 = ssub.s32 %s19, 1
        // Predicated region
        $region13: #{tpu_custom_call.1} parent=11 // pred_check
          %p154 = pneg %p92
        $region14: #{tpu_custom_call.1} parent=11 // pred_check_branch
          %156 = sbr.rel (%p154) target = $region16
        $region15: #{tpu_custom_call.1} parent=11 // pred_region
          %s158 = ssub.s32 3072, 3072
          %159 = vsyncadd [#allocation7], %s158
          %s160 = sshll.u32 [#allocation8], 4
          %s161 = int_to_ptr.vmem [resolvable:$true] %s160
          %166 = dma.hbm_to_vmem [thread:$0]  %s2, 3072, %s161, [#allocation7], 64, 64, 4
        $region16: #{tpu_custom_call.1} parent=11 // pred_fallthru
          _
        // Predicated region
        $region17: #{tpu_custom_call.1} parent=11 // pred_check
          %p167 = pneg %p113
        $region18: #{tpu_custom_call.1} parent=11 // pred_check_branch
          %169 = sbr.rel (%p167) target = $region20
        $region19: #{tpu_custom_call.1} parent=11 // pred_region
          _
        $region20: #{tpu_custom_call.1} parent=11 // pred_fallthru
          _
      $region12: #{tpu_custom_call.1} parent=5 // pred_fallthru
        _
      %p170 = scmp.lt.s32.totalorder %s19, 2
      // Predicated region
      $region21: #{tpu_custom_call.1} parent=5 // pred_check
        %p171 = pneg %p170
      $region22: #{tpu_custom_call.1} parent=5 // pred_check_branch
        %173 = sbr.rel (%p171) target = $region24
      $region23: #{tpu_custom_call.1} parent=5 // pred_region
        // Predicated region
        $region25: #{tpu_custom_call.1} parent=23 // pred_check
          %p174 = pneg %p39
        $region26: #{tpu_custom_call.1} parent=23 // pred_check_branch
          %176 = sbr.rel (%p174) target = $region28
        $region27: #{tpu_custom_call.1} parent=23 // pred_region
          %s177 = sand.u32 %s29, 1
          %s178 = scalar_lea.sflag [#allocation4], %s177
          %s179 = sand.u32 %s29, 1
          %s180 = smul.addr %s179, 4
          %s181 = scalar_lea.vmem [#allocation3], %s180
          %s183 = ssub.s32 64, 64
          %184 = vsyncadd %s178, %s183
          %s185 = smul.addr %s19, 64
          %s186 = scalar_lea.hbm %s0, %s185
          %s188 = sshll.u32 %s181, 4
          %s189 = int_to_ptr.vmem [resolvable:$true] %s188
          %191 = dma.hbm_to_vmem [thread:$0]  %s186, 64, %s189, %s178
        $region28: #{tpu_custom_call.1} parent=23 // pred_fallthru
          _
        // Predicated region
        $region29: #{tpu_custom_call.1} parent=23 // pred_check
          %p192 = pneg %p65
        $region30: #{tpu_custom_call.1} parent=23 // pred_check_branch
          %194 = sbr.rel (%p192) target = $region32
        $region31: #{tpu_custom_call.1} parent=23 // pred_region
          %s195 = sand.u32 %s19, 1
          %s196 = scalar_lea.sflag [#allocation7], %s195
          %s197 = sand.u32 %s55, 1
          %s198 = smul.addr %s197, 8
          %s199 = scalar_lea.vmem [#allocation6], %s198
          %s201 = ssub.s32 128, 128
          %202 = vsyncadd %s196, %s201
          %s203 = smul.addr %s19, 128
          %s204 = scalar_lea.hbm %s1, %s203
          %s206 = sshll.u32 %s199, 4
          %s207 = int_to_ptr.vmem [resolvable:$true] %s206
          %209 = dma.hbm_to_vmem [thread:$0]  %s204, 128, %s207, %s196
        $region32: #{tpu_custom_call.1} parent=23 // pred_fallthru
          _
      $region24: #{tpu_custom_call.1} parent=5 // pred_fallthru
        _
      %p210 = scmp.le.s32.totalorder 1, %s19
      %p211 = scmp.lt.s32.totalorder %s19, 3
      %p212 = pnand %p210, %p211
      %p213 = pneg %p212
      // Predicated region
      $region33: #{tpu_custom_call.1} parent=5 // pred_check
        _
      $region34: #{tpu_custom_call.1} parent=5 // pred_check_branch
        %215 = sbr.rel (%p212) target = $region36
      $region35: #{tpu_custom_call.1} parent=5 // pred_region
        %s216 = ssub.s32 %s19, 1
        %s217 = sand.u32 %s32, 1
        %s218 = scalar_lea.sflag [#allocation4], %s217
        %s219 = sand.u32 %s32, 1
        %s220 = smul.addr %s219, 4
        %s221 = scalar_lea.vmem [#allocation3], %s220
        // Predicated region
        $region37: #{tpu_custom_call.1} parent=35 // pred_check
          %p222 = pneg %p45
        $region38: #{tpu_custom_call.1} parent=35 // pred_check_branch
          %224 = sbr.rel (%p222) target = $region40
        $region39: #{tpu_custom_call.1} parent=35 // pred_region
          %225 = dma.done %s218, 64
        $region40: #{tpu_custom_call.1} parent=35 // pred_fallthru
          _
        %s226 = sand.u32 %s24, 1
        %s227 = scalar_lea.sflag [#allocation7], %s226
        %s228 = sand.u32 %s58, 1
        %s229 = smul.addr %s228, 8
        %s230 = scalar_lea.vmem [#allocation6], %s229
        // Predicated region
        $region41: #{tpu_custom_call.1} parent=35 // pred_check
          %p231 = pneg %p71
        $region42: #{tpu_custom_call.1} parent=35 // pred_check_branch
          %233 = sbr.rel (%p231) target = $region44
        $region43: #{tpu_custom_call.1} parent=35 // pred_region
          %234 = dma.done %s227, 128
        $region44: #{tpu_custom_call.1} parent=35 // pred_fallthru
          _
        // Predicated region
        $region45: #{tpu_custom_call.1} parent=35 // pred_check
          %p235 = pneg %p92
        $region46: #{tpu_custom_call.1} parent=35 // pred_check_branch
          %237 = sbr.rel (%p235) target = $region48
        $region47: #{tpu_custom_call.1} parent=35 // pred_region
          %238 = dma.done [#allocation7], 3072
        $region48: #{tpu_custom_call.1} parent=35 // pred_fallthru
          _
        %s239 = sand.u32 %s32, 1
        %s240 = scalar_lea.sflag [#allocation4], %s239
        %s241 = sand.u32 %s32, 1
        %s242 = smul.addr %s241, 4
        %s243 = scalar_lea.vmem [#allocation3], %s242
        %p244 = pneg %p45
        %p245 = pneg %p42
        %s246 = sand.u32 %s24, 1
        %s247 = scalar_lea.sflag [#allocation7], %s246
        %s248 = sand.u32 %s58, 1
        %s249 = smul.addr %s248, 8
        %s250 = scalar_lea.vmem [#allocation6], %s249
        %p251 = pneg %p71
        %p252 = pneg %p68
        %p253 = pneg %p92
        %p254 = pneg %p89
        %p255 = pneg %p113
        %p256 = pneg %p110
        %p257 = pneg %p139
        %p258 = pneg %p136
        %s259 = sand.u32 %s126, 1
        %s260 = scalar_lea.sflag [#allocation5], %s259
        %s261 = sand.u32 %s126, 1
        %s262 = smul.addr %s261, 8
        %s263 = scalar_lea.vmem [#allocation9], %s262
        %v265 = vld [vmem:[%s230] sm:$0xff]
        %v266 = vpack.c.bf16 %v265, %v265
        %267 = vst [vmem:[#allocation2] sm:$0xf] %v266
        %v268 = vld [vmem:[%s221] sm:$0xf]
        %v269 = vld [vmem:[#allocation2] sm:$0xf]
        %vm270 = vcmask 64512
        %v272 = vsel %vm270, %v268, 0
        %vm274 = vcmask 1043456
        %v276 = vsel %vm274, %v269, 0
        %278 = vmatprep.subr.bf16.mxu0 0
        %279 = vmatpush1.bf16.msra.mxu0 %v276
        %280 = vmatprep.subr.bf16.mxu0 0
        %281 = vmatpush1.bf16.msra.mxu0 0
        %282 = vmatprep.subr.bf16.mxu0 0
        %283 = vmatpush1.bf16.msra.mxu0 0
        %284 = vmatprep.subr.bf16.mxu0 0
        %285 = vmatpush1.bf16.msra.mxu0 0
        %286 = vmatprep.subr.bf16.mxu0 0
        %287 = vmatpush1.bf16.msra.mxu0 0
        %288 = vmatprep.subr.bf16.mxu0 0
        %289 = vmatpush1.bf16.msra.mxu0 0
        %290 = vmatprep.subr.bf16.mxu0 0
        %291 = vmatpush1.bf16.msra.mxu0 0
        %292 = vmatprep.subr.bf16.mxu0 0
        %293 = vmatpush1.bf16.msra.mxu0 0
        %294 = vmatprep.subr.bf16.mxu0 0
        %295 = vmatpush1.bf16.msra.mxu0 0
        %296 = vmatprep.subr.bf16.mxu0 0
        %297 = vmatpush1.bf16.msra.mxu0 0
        %298 = vmatprep.subr.bf16.mxu0 0
        %299 = vmatpush1.bf16.msra.mxu0 0
        %300 = vmatprep.subr.bf16.mxu0 0
        %301 = vmatpush1.bf16.msra.mxu0 0
        %302 = vmatprep.subr.bf16.mxu0 0
        %303 = vmatpush1.bf16.msra.mxu0 0
        %304 = vmatprep.subr.bf16.mxu0 0
        %305 = vmatpush1.bf16.msra.mxu0 0
        %306 = vmatprep.subr.bf16.mxu0 0
        %307 = vmatpush1.bf16.msra.mxu0 0
        %308 = vmatprep.subr.bf16.mxu0 0
        %309 = vmatpush1.bf16.msra.mxu0 0
        %310 = vmatprep.mubr.bf16.mxu0 0
        %311 = vmatmul.mubr.bf16.gmra.mrb[0].mxu0 %v272
        %v312 = vpop.f32.mrb[0].mxu0
        %v313 = vadd.f32 0.0, %v312
        %v314 = vpop.f32.mrb[0].mxu0
        %v315 = vpop.f32.mrb[0].mxu0
        %v316 = vpop.f32.mrb[0].mxu0
        %317 = vdwg.mxu0
        %v318 = vpack.c.bf16 %v313, %v313
        %v319 = vld [vmem:[#allocation8] sm:$0xf]
        %v320 = vld [vmem:[#allocation8 + $0x4] sm:$0xf]
        %v321 = vld [vmem:[#allocation8 + $0x8] sm:$0xf]
        %v322 = vld [vmem:[#allocation8 + $0xc] sm:$0xf]
        %v323 = vld [vmem:[#allocation8 + $0x10] sm:$0xf]
        %v324 = vld [vmem:[#allocation8 + $0x14] sm:$0xf]
        %v325 = vld [vmem:[#allocation8 + $0x18] sm:$0xf]
        %v326 = vld [vmem:[#allocation8 + $0x1c] sm:$0xf]
        %v327 = vld [vmem:[#allocation8 + $0x20] sm:$0xf]
        %v328 = vld [vmem:[#allocation8 + $0x24] sm:$0xf]
        %v329 = vld [vmem:[#allocation8 + $0x28] sm:$0xf]
        %v330 = vld [vmem:[#allocation8 + $0x2c] sm:$0xf]
        %v331 = vld [vmem:[#allocation8 + $0x30] sm:$0xf]
        %v332 = vld [vmem:[#allocation8 + $0x34] sm:$0xf]
        %v333 = vld [vmem:[#allocation8 + $0x38] sm:$0xf]
        %v334 = vld [vmem:[#allocation8 + $0x3c] sm:$0xf]
        %v335 = vld [vmem:[%s3] sm:$0x1]
        %v337 = vlaneseq
        %v338 = vshrl.u32 %v337, 7
        %v339 = vsub.s32 0, %v338
        %v340 = vrot.slane %v335, %v339
        %v358 = vunpack.c.l.b16 %v319
        %v359 = vunpack.c.l.b16 %v320
        %v360 = vunpack.c.l.b16 %v321
        %v361 = vunpack.c.l.b16 %v322
        %v362 = vunpack.c.l.b16 %v323
        %v363 = vunpack.c.l.b16 %v324
        %v364 = vunpack.c.l.b16 %v325
        %v365 = vunpack.c.l.b16 %v326
        %v366 = vunpack.c.l.b16 %v327
        %v367 = vunpack.c.l.b16 %v328
        %v368 = vunpack.c.l.b16 %v329
        %v369 = vunpack.c.l.b16 %v330
        %v370 = vunpack.c.l.b16 %v331
        %v371 = vunpack.c.l.b16 %v332
        %v372 = vunpack.c.l.b16 %v333
        %v373 = vunpack.c.l.b16 %v334
        %v374 = vpack.c.b16 %v359, %v358
        %v375 = vpack.c.b16 %v361, %v360
        %v376 = vpack.c.b16 %v363, %v362
        %v377 = vpack.c.b16 %v365, %v364
        %v378 = vpack.c.b16 %v367, %v366
        %v379 = vpack.c.b16 %v369, %v368
        %v380 = vpack.c.b16 %v371, %v370
        %v381 = vpack.c.b16 %v373, %v372
        %390 = vmatprep.subr.bf16.mxu0 0
        %391 = vmatpush1.bf16.msra.mxu0 %v374
        %392 = vmatprep.subr.bf16.mxu0 0
        %393 = vmatpush1.bf16.msra.mxu0 %v375
        %394 = vmatprep.subr.bf16.mxu0 0
        %395 = vmatpush1.bf16.msra.mxu0 %v376
        %396 = vmatprep.subr.bf16.mxu0 0
        %397 = vmatpush1.bf16.msra.mxu0 %v377
        %398 = vmatprep.subr.bf16.mxu0 0
        %399 = vmatpush1.bf16.msra.mxu0 %v378
        %400 = vmatprep.subr.bf16.mxu0 0
        %401 = vmatpush1.bf16.msra.mxu0 %v379
        %402 = vmatprep.subr.bf16.mxu0 0
        %403 = vmatpush1.bf16.msra.mxu0 %v380
        %404 = vmatprep.subr.bf16.mxu0 0
        %405 = vmatpush1.bf16.msra.mxu0 %v381
        %406 = vmatprep.subr.bf16.mxu0 0
        %407 = vmatpush1.bf16.msra.mxu0 0
        %408 = vmatprep.subr.bf16.mxu0 0
        %409 = vmatpush1.bf16.msra.mxu0 0
        %410 = vmatprep.subr.bf16.mxu0 0
        %411 = vmatpush1.bf16.msra.mxu0 0
        %412 = vmatprep.subr.bf16.mxu0 0
        %413 = vmatpush1.bf16.msra.mxu0 0
        %414 = vmatprep.subr.bf16.mxu0 0
        %415 = vmatpush1.bf16.msra.mxu0 0
        %416 = vmatprep.subr.bf16.mxu0 0
        %417 = vmatpush1.bf16.msra.mxu0 0
        %418 = vmatprep.subr.bf16.mxu0 0
        %419 = vmatpush1.bf16.msra.mxu0 0
        %420 = vmatprep.subr.bf16.mxu0 0
        %421 = vmatpush1.bf16.msra.mxu0 0
        %422 = vmatprep.mubr.bf16.mxu0 0
        %423 = vmatmul.mubr.bf16.gmra.mrb[0].mxu0 %v318
        %v424 = vpop.f32.mrb[0].mxu0
        %v425 = vadd.f32 %v340, %v424
        %v426 = vpop.f32.mrb[0].mxu0
        %v427 = vpop.f32.mrb[0].mxu0
        %v428 = vpop.f32.mrb[0].mxu0
        %429 = vdwg.mxu0
        %v430 = vmax.f32 %v425, 0.0
        %v431 = vpack.c.bf16 %v430, %v430
        %432 = vst [vmem:[#allocation2] sm:$0xf] %v431
        %v433 = vld [vmem:[#allocation2] sm:$0xf]
        %v435 = vsel %vm274, %v433, 0
        %437 = vmatprep.subr.bf16.mxu0 0
        %438 = vmatpush1.bf16.msra.mxu0 %v435
        %439 = vmatprep.subr.bf16.mxu0 0
        %440 = vmatpush1.bf16.msra.mxu0 0
        %441 = vmatprep.subr.bf16.mxu0 0
        %442 = vmatpush1.bf16.msra.mxu0 0
        %443 = vmatprep.subr.bf16.mxu0 0
        %444 = vmatpush1.bf16.msra.mxu0 0
        %445 = vmatprep.subr.bf16.mxu0 0
        %446 = vmatpush1.bf16.msra.mxu0 0
        %447 = vmatprep.subr.bf16.mxu0 0
        %448 = vmatpush1.bf16.msra.mxu0 0
        %449 = vmatprep.subr.bf16.mxu0 0
        %450 = vmatpush1.bf16.msra.mxu0 0
        %451 = vmatprep.subr.bf16.mxu0 0
        %452 = vmatpush1.bf16.msra.mxu0 0
        %453 = vmatprep.subr.bf16.mxu0 0
        %454 = vmatpush1.bf16.msra.mxu0 0
        %455 = vmatprep.subr.bf16.mxu0 0
        %456 = vmatpush1.bf16.msra.mxu0 0
        %457 = vmatprep.subr.bf16.mxu0 0
        %458 = vmatpush1.bf16.msra.mxu0 0
        %459 = vmatprep.subr.bf16.mxu0 0
        %460 = vmatpush1.bf16.msra.mxu0 0
        %461 = vmatprep.subr.bf16.mxu0 0
        %462 = vmatpush1.bf16.msra.mxu0 0
        %463 = vmatprep.subr.bf16.mxu0 0
        %464 = vmatpush1.bf16.msra.mxu0 0
        %465 = vmatprep.subr.bf16.mxu0 0
        %466 = vmatpush1.bf16.msra.mxu0 0
        %467 = vmatprep.subr.bf16.mxu0 0
        %468 = vmatpush1.bf16.msra.mxu0 0
        %469 = vmatprep.mubr.bf16.mxu0 0
        %470 = vmatmul.mubr.bf16.gmra.mrb[0].mxu0 %v272
        %v471 = vpop.f32.mrb[0].mxu0
        %v472 = vadd.f32 0.0, %v471
        %v473 = vpop.f32.mrb[0].mxu0
        %v474 = vpop.f32.mrb[0].mxu0
        %v475 = vpop.f32.mrb[0].mxu0
        %476 = vdwg.mxu0
        %v477 = vpack.c.bf16 %v472, %v472
        %s478 = scalar_lea.vmem [#allocation8], 64
        %v479 = vld [vmem:[%s478] sm:$0xf]
        %v480 = vld [vmem:[%s478 + $0x4] sm:$0xf]
        %v481 = vld [vmem:[%s478 + $0x8] sm:$0xf]
        %v482 = vld [vmem:[%s478 + $0xc] sm:$0xf]
        %v483 = vld [vmem:[%s478 + $0x10] sm:$0xf]
        %v484 = vld [vmem:[%s478 + $0x14] sm:$0xf]
        %v485 = vld [vmem:[%s478 + $0x18] sm:$0xf]
        %v486 = vld [vmem:[%s478 + $0x1c] sm:$0xf]
        %v487 = vld [vmem:[%s478 + $0x20] sm:$0xf]
        %v488 = vld [vmem:[%s478 + $0x24] sm:$0xf]
        %v489 = vld [vmem:[%s478 + $0x28] sm:$0xf]
        %v490 = vld [vmem:[%s478 + $0x2c] sm:$0xf]
        %v491 = vld [vmem:[%s478 + $0x30] sm:$0xf]
        %v492 = vld [vmem:[%s478 + $0x34] sm:$0xf]
        %v493 = vld [vmem:[%s478 + $0x38] sm:$0xf]
        %v494 = vld [vmem:[%s478 + $0x3c] sm:$0xf]
        %s495 = scalar_lea.vmem %s3, 1
        %v496 = vld [vmem:[%s495] sm:$0x1]
        %v498 = vlaneseq
        %v499 = vshrl.u32 %v498, 7
        %v500 = vsub.s32 0, %v499
        %v501 = vrot.slane %v496, %v500
        %v519 = vunpack.c.l.b16 %v479
        %v520 = vunpack.c.l.b16 %v480
        %v521 = vunpack.c.l.b16 %v481
        %v522 = vunpack.c.l.b16 %v482
        %v523 = vunpack.c.l.b16 %v483
        %v524 = vunpack.c.l.b16 %v484
        %v525 = vunpack.c.l.b16 %v485
        %v526 = vunpack.c.l.b16 %v486
        %v527 = vunpack.c.l.b16 %v487
        %v528 = vunpack.c.l.b16 %v488
        %v529 = vunpack.c.l.b16 %v489
        %v530 = vunpack.c.l.b16 %v490
        %v531 = vunpack.c.l.b16 %v491
        %v532 = vunpack.c.l.b16 %v492
        %v533 = vunpack.c.l.b16 %v493
        %v534 = vunpack.c.l.b16 %v494
        %v535 = vpack.c.b16 %v520, %v519
        %v536 = vpack.c.b16 %v522, %v521
        %v537 = vpack.c.b16 %v524, %v523
        %v538 = vpack.c.b16 %v526, %v525
        %v539 = vpack.c.b16 %v528, %v527
        %v540 = vpack.c.b16 %v530, %v529
        %v541 = vpack.c.b16 %v532, %v531
        %v542 = vpack.c.b16 %v534, %v533
        %551 = vmatprep.subr.bf16.mxu0 0
        %552 = vmatpush1.bf16.msra.mxu0 %v535
        %553 = vmatprep.subr.bf16.mxu0 0
        %554 = vmatpush1.bf16.msra.mxu0 %v536
        %555 = vmatprep.subr.bf16.mxu0 0
        %556 = vmatpush1.bf16.msra.mxu0 %v537
        %557 = vmatprep.subr.bf16.mxu0 0
        %558 = vmatpush1.bf16.msra.mxu0 %v538
        %559 = vmatprep.subr.bf16.mxu0 0
        %560 = vmatpush1.bf16.msra.mxu0 %v539
        %561 = vmatprep.subr.bf16.mxu0 0
        %562 = vmatpush1.bf16.msra.mxu0 %v540
        %563 = vmatprep.subr.bf16.mxu0 0
        %564 = vmatpush1.bf16.msra.mxu0 %v541
        %565 = vmatprep.subr.bf16.mxu0 0
        %566 = vmatpush1.bf16.msra.mxu0 %v542
        %567 = vmatprep.subr.bf16.mxu0 0
        %568 = vmatpush1.bf16.msra.mxu0 0
        %569 = vmatprep.subr.bf16.mxu0 0
        %570 = vmatpush1.bf16.msra.mxu0 0
        %571 = vmatprep.subr.bf16.mxu0 0
        %572 = vmatpush1.bf16.msra.mxu0 0
        %573 = vmatprep.subr.bf16.mxu0 0
        %574 = vmatpush1.bf16.msra.mxu0 0
        %575 = vmatprep.subr.bf16.mxu0 0
        %576 = vmatpush1.bf16.msra.mxu0 0
        %577 = vmatprep.subr.bf16.mxu0 0
        %578 = vmatpush1.bf16.msra.mxu0 0
        %579 = vmatprep.subr.bf16.mxu0 0
        %580 = vmatpush1.bf16.msra.mxu0 0
        %581 = vmatprep.subr.bf16.mxu0 0
        %582 = vmatpush1.bf16.msra.mxu0 0
        %583 = vmatprep.mubr.bf16.mxu0 0
        %584 = vmatmul.mubr.bf16.gmra.mrb[0].mxu0 %v477
        %v585 = vpop.f32.mrb[0].mxu0
        %v586 = vadd.f32 %v501, %v585
        %v587 = vpop.f32.mrb[0].mxu0
        %v588 = vpop.f32.mrb[0].mxu0
        %v589 = vpop.f32.mrb[0].mxu0
        %590 = vdwg.mxu0
        %v591 = vmax.f32 %v586, 0.0
        %v592 = vpack.c.bf16 %v591, %v591
        %593 = vst [vmem:[#allocation2] sm:$0xf] %v592
        %v594 = vld [vmem:[#allocation2] sm:$0xf]
        %v596 = vsel %vm274, %v594, 0
        %598 = vmatprep.subr.bf16.mxu0 0
        %599 = vmatpush1.bf16.msra.mxu0 %v596
        %600 = vmatprep.subr.bf16.mxu0 0
        %601 = vmatpush1.bf16.msra.mxu0 0
        %602 = vmatprep.subr.bf16.mxu0 0
        %603 = vmatpush1.bf16.msra.mxu0 0
        %604 = vmatprep.subr.bf16.mxu0 0
        %605 = vmatpush1.bf16.msra.mxu0 0
        %606 = vmatprep.subr.bf16.mxu0 0
        %607 = vmatpush1.bf16.msra.mxu0 0
        %608 = vmatprep.subr.bf16.mxu0 0
        %609 = vmatpush1.bf16.msra.mxu0 0
        %610 = vmatprep.subr.bf16.mxu0 0
        %611 = vmatpush1.bf16.msra.mxu0 0
        %612 = vmatprep.subr.bf16.mxu0 0
        %613 = vmatpush1.bf16.msra.mxu0 0
        %614 = vmatprep.subr.bf16.mxu0 0
        %615 = vmatpush1.bf16.msra.mxu0 0
        %616 = vmatprep.subr.bf16.mxu0 0
        %617 = vmatpush1.bf16.msra.mxu0 0
        %618 = vmatprep.subr.bf16.mxu0 0
        %619 = vmatpush1.bf16.msra.mxu0 0
        %620 = vmatprep.subr.bf16.mxu0 0
        %621 = vmatpush1.bf16.msra.mxu0 0
        %622 = vmatprep.subr.bf16.mxu0 0
        %623 = vmatpush1.bf16.msra.mxu0 0
        %624 = vmatprep.subr.bf16.mxu0 0
        %625 = vmatpush1.bf16.msra.mxu0 0
        %626 = vmatprep.subr.bf16.mxu0 0
        %627 = vmatpush1.bf16.msra.mxu0 0
        %628 = vmatprep.subr.bf16.mxu0 0
        %629 = vmatpush1.bf16.msra.mxu0 0
        %630 = vmatprep.mubr.bf16.mxu0 0
        %631 = vmatmul.mubr.bf16.gmra.mrb[0].mxu0 %v272
        %v632 = vpop.f32.mrb[0].mxu0
        %v633 = vadd.f32 0.0, %v632
        %v634 = vpop.f32.mrb[0].mxu0
        %v635 = vpop.f32.mrb[0].mxu0
        %v636 = vpop.f32.mrb[0].mxu0
        %637 = vdwg.mxu0
        %v638 = vpack.c.bf16 %v633, %v633
        %s639 = scalar_lea.vmem [#allocation8], 128
        %v640 = vld [vmem:[%s639] sm:$0xf]
        %v641 = vld [vmem:[%s639 + $0x4] sm:$0xf]
        %v642 = vld [vmem:[%s639 + $0x8] sm:$0xf]
        %v643 = vld [vmem:[%s639 + $0xc] sm:$0xf]
        %v644 = vld [vmem:[%s639 + $0x10] sm:$0xf]
        %v645 = vld [vmem:[%s639 + $0x14] sm:$0xf]
        %v646 = vld [vmem:[%s639 + $0x18] sm:$0xf]
        %v647 = vld [vmem:[%s639 + $0x1c] sm:$0xf]
        %v648 = vld [vmem:[%s639 + $0x20] sm:$0xf]
        %v649 = vld [vmem:[%s639 + $0x24] sm:$0xf]
        %v650 = vld [vmem:[%s639 + $0x28] sm:$0xf]
        %v651 = vld [vmem:[%s639 + $0x2c] sm:$0xf]
        %v652 = vld [vmem:[%s639 + $0x30] sm:$0xf]
        %v653 = vld [vmem:[%s639 + $0x34] sm:$0xf]
        %v654 = vld [vmem:[%s639 + $0x38] sm:$0xf]
        %v655 = vld [vmem:[%s639 + $0x3c] sm:$0xf]
        %s656 = scalar_lea.vmem %s3, 2
        %v657 = vld [vmem:[%s656] sm:$0x1]
        %v659 = vlaneseq
        %v660 = vshrl.u32 %v659, 7
        %v661 = vsub.s32 0, %v660
        %v662 = vrot.slane %v657, %v661
        %v680 = vunpack.c.l.b16 %v640
        %v681 = vunpack.c.l.b16 %v641
        %v682 = vunpack.c.l.b16 %v642
        %v683 = vunpack.c.l.b16 %v643
        %v684 = vunpack.c.l.b16 %v644
        %v685 = vunpack.c.l.b16 %v645
        %v686 = vunpack.c.l.b16 %v646
        %v687 = vunpack.c.l.b16 %v647
        %v688 = vunpack.c.l.b16 %v648
        %v689 = vunpack.c.l.b16 %v649
        %v690 = vunpack.c.l.b16 %v650
        %v691 = vunpack.c.l.b16 %v651
        %v692 = vunpack.c.l.b16 %v652
        %v693 = vunpack.c.l.b16 %v653
        %v694 = vunpack.c.l.b16 %v654
        %v695 = vunpack.c.l.b16 %v655
        %v696 = vpack.c.b16 %v681, %v680
        %v697 = vpack.c.b16 %v683, %v682
        %v698 = vpack.c.b16 %v685, %v684
        %v699 = vpack.c.b16 %v687, %v686
        %v700 = vpack.c.b16 %v689, %v688
        %v701 = vpack.c.b16 %v691, %v690
        %v702 = vpack.c.b16 %v693, %v692
        %v703 = vpack.c.b16 %v695, %v694
        %712 = vmatprep.subr.bf16.mxu0 0
        %713 = vmatpush1.bf16.msra.mxu0 %v696
        %714 = vmatprep.subr.bf16.mxu0 0
        %715 = vmatpush1.bf16.msra.mxu0 %v697
        %716 = vmatprep.subr.bf16.mxu0 0
        %717 = vmatpush1.bf16.msra.mxu0 %v698
        %718 = vmatprep.subr.bf16.mxu0 0
        %719 = vmatpush1.bf16.msra.mxu0 %v699
        %720 = vmatprep.subr.bf16.mxu0 0
        %721 = vmatpush1.bf16.msra.mxu0 %v700
        %722 = vmatprep.subr.bf16.mxu0 0
        %723 = vmatpush1.bf16.msra.mxu0 %v701
        %724 = vmatprep.subr.bf16.mxu0 0
        %725 = vmatpush1.bf16.msra.mxu0 %v702
        %726 = vmatprep.subr.bf16.mxu0 0
        %727 = vmatpush1.bf16.msra.mxu0 %v703
        %728 = vmatprep.subr.bf16.mxu0 0
        %729 = vmatpush1.bf16.msra.mxu0 0
        %730 = vmatprep.subr.bf16.mxu0 0
        %731 = vmatpush1.bf16.msra.mxu0 0
        %732 = vmatprep.subr.bf16.mxu0 0
        %733 = vmatpush1.bf16.msra.mxu0 0
        %734 = vmatprep.subr.bf16.mxu0 0
        %735 = vmatpush1.bf16.msra.mxu0 0
        %736 = vmatprep.subr.bf16.mxu0 0
        %737 = vmatpush1.bf16.msra.mxu0 0
        %738 = vmatprep.subr.bf16.mxu0 0
        %739 = vmatpush1.bf16.msra.mxu0 0
        %740 = vmatprep.subr.bf16.mxu0 0
        %741 = vmatpush1.bf16.msra.mxu0 0
        %742 = vmatprep.subr.bf16.mxu0 0
        %743 = vmatpush1.bf16.msra.mxu0 0
        %744 = vmatprep.mubr.bf16.mxu0 0
        %745 = vmatmul.mubr.bf16.gmra.mrb[0].mxu0 %v638
        %v746 = vpop.f32.mrb[0].mxu0
        %v747 = vadd.f32 %v662, %v746
        %v748 = vpop.f32.mrb[0].mxu0
        %v749 = vpop.f32.mrb[0].mxu0
        %v750 = vpop.f32.mrb[0].mxu0
        %751 = vdwg.mxu0
        %752 = vst [vmem:[%s263] sm:$0xff] %v747
        %s753 = sand.u32 %s126, 1
        %s754 = scalar_lea.sflag [#allocation5], %s753
        %s755 = sand.u32 %s126, 1
        %s756 = smul.addr %s755, 8
        %s757 = scalar_lea.vmem [#allocation9], %s756
        // Predicated region
        $region49: #{tpu_custom_call.1} parent=35 // pred_check
          %p758 = pneg %p136
        $region50: #{tpu_custom_call.1} parent=35 // pred_check_branch
          %760 = sbr.rel (%p758) target = $region52
        $region51: #{tpu_custom_call.1} parent=35 // pred_region
          %s762 = ssub.s32 128, 128
          %763 = vsyncadd %s754, %s762
          %s764 = smul.addr %s24, 128
          %s765 = scalar_lea.hbm %s4, %s764
          %s767 = sshll.u32 %s757, 4
          %s768 = int_to_ptr.vmem [resolvable:$true] %s767
          %770 = dma.vmem_to_hbm [thread:$0]  %s768, 128, %s765, %s754
        $region52: #{tpu_custom_call.1} parent=35 // pred_fallthru
          _
      $region36: #{tpu_custom_call.1} parent=5 // pred_fallthru
        _
      %p771 = scmp.le.s32.totalorder 2, %s19
      // Predicated region
      $region53: #{tpu_custom_call.1} parent=5 // pred_check
        %p772 = pneg %p771
      $region54: #{tpu_custom_call.1} parent=5 // pred_check_branch
        %774 = sbr.rel (%p772) target = $region56
      $region55: #{tpu_custom_call.1} parent=5 // pred_region
        %s775 = ssub.s32 %s19, 2
        // Predicated region
        $region57: #{tpu_custom_call.1} parent=55 // pred_check
          %p776 = pneg %p142
        $region58: #{tpu_custom_call.1} parent=55 // pred_check_branch
          %778 = sbr.rel (%p776) target = $region60
        $region59: #{tpu_custom_call.1} parent=55 // pred_region
          %s779 = sand.u32 %s127, 1
          %s780 = scalar_lea.sflag [#allocation5], %s779
          %s781 = sand.u32 %s127, 1
          %s782 = smul.addr %s781, 8
          %s783 = scalar_lea.vmem [#allocation9], %s782
          %784 = dma.done %s780, 128
        $region60: #{tpu_custom_call.1} parent=55 // pred_fallthru
          _
      $region56: #{tpu_custom_call.1} parent=5 // pred_fallthru
        _
    $region6: #{tpu_custom_call.1} parent=1 // loop_footer
      %s23 = sadd.s32 1, %s19
    $region7: #{tpu_custom_call.1} parent=1 // loop_footer_branch
      %18 = sbr.rel target = $region3
    $region8: #{tpu_custom_call.1} parent=1 // loop_exit
      _
    %785 = vsyncpa [#allocation4], 1
    %s786 = scalar_lea.sflag [#allocation4], 1
    %787 = vsyncpa %s786, 1
    %788 = vsyncpa [#allocation7], 1
    %s789 = scalar_lea.sflag [#allocation7], 1
    %790 = vsyncpa %s789, 1
    %791 = vsyncpa [#allocation5], 1
    %s792 = scalar_lea.sflag [#allocation5], 1
    %793 = vsyncpa %s792, 1

</llo_original>
